<compile_context>
chip_gen: v5e
topology: v5e:2x2
jax: 0.10.0
libtpu: 0.0.40
codegen_flags: <defaults>
</compile_context>

<pallas_src>
import jax
import jax.numpy as jnp
from jax import lax
from jax.experimental import pallas as pl
from jax.experimental.pallas import tpu as pltpu

_EPS = 1e-8  # torch cosine_similarity default eps


def _cosine_sim_kernel(user_ref, tfidf_ref, inv_row_ref, inv_user_ref,
                       out_ref, acc_ref):
    # user_ref    : (1, TK)    VMEM slice of the user profile (f32)
    # tfidf_ref   : (TN, TK)   VMEM tile of the fixed TF-IDF matrix
    # inv_row_ref : (1, TN)    precomputed 1/max(||row||, eps), lane-dense
    # inv_user_ref: (1, 1)     SMEM scalar 1/max(||user||, eps)
    # out_ref     : (1, TN)    lane-dense output tile
    # acc_ref     : (1, TN)    f32 VMEM accumulator over the K (vocab) axis
    k = pl.program_id(1)

    @pl.when(k == 0)
    def _():
        acc_ref[...] = jnp.zeros_like(acc_ref)

    t = tfidf_ref[...]                        # (TN, TK), stored dtype
    u = user_ref[...].astype(t.dtype)         # (1, TK) — tiny cast, native MXU pass
    # Row dot products on the MXU, f32 accumulate, default precision
    # (bf16x3 for f32 inputs) — plenty accurate for cosine similarity and
    # half the vmatmul passes of Precision.HIGHEST.
    acc_ref[...] += lax.dot_general(
        u, t, (((1,), (1,)), ((), ())),       # contract the vocab axis of both
        preferred_element_type=jnp.float32)

    @pl.when(k == pl.num_programs(1) - 1)
    def _():
        out_ref[...] = acc_ref[...] * inv_row_ref[...] * inv_user_ref[0, 0]


def _choose_tiling(n_ads: int, d: int, itemsize: int):
    """Generation-aware tile sizes + VMEM limit."""
    try:
        phys_vmem = int(pltpu.get_tpu_info().vmem_capacity_bytes)
    except Exception:
        phys_vmem = 64 * 1024 * 1024  # conservative (v7x per-TC VMEM)

    # Byte budget for the double-buffered streamed TF-IDF tile pair:
    # ~24 MiB on v5e/v6e (128 MiB physical), ~16 MiB on v7x (64 MiB physical).
    tile_budget = min(24 << 20, phys_vmem // 4)
    vmem_limit = min(phys_vmem // 2, tile_budget + (8 << 20))

    n_ceil = pl.cdiv(n_ads, 128) * 128

    min_tile_bytes = 2 * 128 * d * itemsize
    if min_tile_bytes > tile_budget:
        # Huge vocabulary: also tile the reduction (D) axis; degrade
        # gracefully instead of exceeding scoped/physical VMEM.
        tile_n = 128
        tile_k = max(128, ((tile_budget // (2 * 128 * itemsize)) // 128) * 128)
        d_pad = pl.cdiv(d, tile_k) * tile_k
    else:
        tile_k = d
        d_pad = d
        # Byte-capped row count (no hard 1024-row cap), multiple of 128 for a
        # lane-dense output tile; don't pad tiny N past one 128-row tile.
        tile_n = max(128, (tile_budget // (2 * d * itemsize) // 128) * 128)
        tile_n = min(tile_n, n_ceil)
        # Keep at least 2 grid steps so dimension_semantics=("parallel",...)
        # can shard the N axis across v7x's two TensorCores.
        if n_ceil >= 256:
            tile_n = min(tile_n, max(128, ((n_ceil // 2) // 128) * 128))

    n_pad = pl.cdiv(n_ads, tile_n) * tile_n
    return tile_n, tile_k, n_pad, d_pad, vmem_limit


def make_recommendation_model(tfidf_matrix, *, store_dtype=jnp.float32):
    """Build the forward fn for a fixed TF-IDF matrix (the frozen nn.Parameter).

    store_dtype=jnp.bfloat16 halves the streamed HBM bytes (the kernel is
    bandwidth-bound); accumulation stays f32 on the MXU.
    """
    tfidf_f32 = jnp.asarray(tfidf_matrix, jnp.float32)
    n_ads, d = tfidf_f32.shape
    itemsize = jnp.dtype(store_dtype).itemsize

    tile_n, tile_k, n_pad, d_pad, vmem_limit = _choose_tiling(n_ads, d, itemsize)

    # Pad ONCE at init (zero rows/cols give similarity 0 and are sliced off).
    if n_pad != n_ads or d_pad != d:
        tfidf_f32 = jnp.pad(tfidf_f32, ((0, n_pad - n_ads), (0, d_pad - d)))

    # Precompute lane-dense per-row inverse norms once, from the f32 matrix.
    sumsq_rows = jnp.sum(tfidf_f32 * tfidf_f32, axis=1)[None, :]        # (1, n_pad)
    inv_row_norm = lax.rsqrt(jnp.maximum(sumsq_rows, _EPS * _EPS))      # (1, n_pad)

    tfidf_stored = tfidf_f32.astype(store_dtype)

    num_n = n_pad // tile_n
    num_k = d_pad // tile_k

    cost = pl.CostEstimate(
        flops=2 * n_pad * d_pad,
        transcendentals=0,
        bytes_accessed=n_pad * d_pad * itemsize + 4 * (2 * n_pad + d_pad + 1),
    )

    kernel = pl.pallas_call(
        _cosine_sim_kernel,
        out_shape=jax.ShapeDtypeStruct((1, n_pad), jnp.float32),
        grid=(num_n, num_k),
        in_specs=[
            pl.BlockSpec((1, tile_k), lambda i, k: (0, k)),        # user profile
            pl.BlockSpec((tile_n, tile_k), lambda i, k: (i, k)),   # streamed TF-IDF tile
            pl.BlockSpec((1, tile_n), lambda i, k: (0, i)),        # precomputed 1/||row||
            pl.BlockSpec(memory_space=pltpu.MemorySpace.SMEM),     # 1/||user|| scalar
        ],
        out_specs=pl.BlockSpec((1, tile_n), lambda i, k: (0, i)),  # lane-dense output
        scratch_shapes=[pltpu.VMEM((1, tile_n), jnp.float32)],
        compiler_params=pltpu.CompilerParams(
            dimension_semantics=("parallel", "arbitrary"),
            vmem_limit_bytes=vmem_limit,
        ),
        cost_estimate=cost,
    )

    @jax.jit
    def _forward(user_profile, tfidf_stored, inv_row_norm):
        user_profile = user_profile.astype(jnp.float32)
        # User norm hoisted out of the kernel: O(D) once per call.
        sumsq_u = jnp.sum(user_profile * user_profile, axis=1, keepdims=True)  # (1, 1)
        inv_user_norm = lax.rsqrt(jnp.maximum(sumsq_u, _EPS * _EPS))
        if d_pad != d:
            user_profile = jnp.pad(user_profile, ((0, 0), (0, d_pad - d)))
        out = kernel(user_profile, tfidf_stored, inv_row_norm, inv_user_norm)
        return out[0, :n_ads]

    def forward(user_profile):
        assert user_profile.shape == (1, d), "user_profile must be (1, D)"
        return _forward(user_profile, tfidf_stored, inv_row_norm)

    return forward


if __name__ == "__main__":
    # Deterministic synthetic stand-in for the TfidfVectorizer output.
    # TODO(synk): the pandas CSV load + sklearn TfidfVectorizer preprocessing is
    # host-side and outside the forward pass; not translated to Pallas.
    key = jax.random.PRNGKey(0)
    k_tfidf, k_user = jax.random.split(key)

    n_ads, vocab = 300, 96   # small, deliberately not multiples of 128
    tfidf = jnp.maximum(jax.random.normal(k_tfidf, (n_ads, vocab), jnp.float32), 0.0)
    user_profile = jnp.maximum(jax.random.normal(k_user, (1, vocab), jnp.float32), 0.0)

    # Pure-JAX reference of torch.nn.functional.cosine_similarity(dim=1).
    def ref(u, t):
        dots = jnp.sum(t * u, axis=1)
        un = jnp.maximum(jnp.sqrt(jnp.sum(u * u, axis=1)), _EPS)
        tn = jnp.maximum(jnp.sqrt(jnp.sum(t * t, axis=1)), _EPS)
        return dots / (un * tn)

    expected = ref(user_profile, tfidf)

    # f32 storage: exact torch semantics.
    fwd_f32 = make_recommendation_model(tfidf, store_dtype=jnp.float32)
    sim = jax.block_until_ready(fwd_f32(user_profile))
    assert sim.shape == (n_ads,)
    assert jnp.allclose(sim, expected, atol=1e-4, rtol=1e-4), (sim, expected)

    # bf16 storage: ~2x less HBM traffic (bandwidth-bound op); looser tolerance.
    fwd_bf16 = make_recommendation_model(tfidf, store_dtype=jnp.bfloat16)
    sim16 = jax.block_until_ready(fwd_bf16(user_profile))
    assert jnp.allclose(sim16, expected, atol=2e-2, rtol=2e-2), (sim16, expected)

    print("KERNEL_OK")
</pallas_src>

<mosaic_0001>
module attributes {stable_mosaic.version = 11 : i64} {
  func.func @_cosine_sim_kernel(%arg0: i32, %arg1: i32, %arg2: memref<1x96xf32, #tpu.memory_space<vmem>>, %arg3: memref<128x96xf32, #tpu.memory_space<vmem>>, %arg4: memref<1x128xf32, #tpu.memory_space<vmem>>, %arg5: memref<1x1xf32, #tpu.memory_space<smem>>, %arg6: memref<1x128xf32, #tpu.memory_space<vmem>>, %arg7: memref<1x128xf32, #tpu.memory_space<vmem>>) attributes {dimension_semantics = [#tpu.dimension_semantics<parallel>, #tpu.dimension_semantics<arbitrary>], iteration_bounds = array<i64: 3, 1>, scalar_prefetch = 0 : i64, scratch_operands = 1 : i64, tpu.core_type = #tpu.core_type<tc>, window_params = [{transform_indices = @transform_0, window_bounds = array<i64: 1, 96>}, {transform_indices = @transform_1, window_bounds = array<i64: 128, 96>}, {transform_indices = @transform_2, window_bounds = array<i64: 1, 128>}, {transform_indices = @transform_3, window_bounds = array<i64: 1, 1>}, {transform_indices = @transform_4, window_bounds = array<i64: 1, 128>}]} {
    %c0_i32 = arith.constant 0 : i32
    %0 = arith.cmpi eq, %arg1, %c0_i32 : i32
    %1 = arith.extui %0 : i1 to i32
    %c0_i32_0 = arith.constant 0 : i32
    %2 = arith.cmpi ne, %1, %c0_i32_0 : i32
    scf.if %2 {
      %cst_10 = arith.constant 0.000000e+00 : f32
      %12 = vector.broadcast %cst_10 : f32 to vector<1x128xf32>
      %c0_11 = arith.constant 0 : index
      %c0_12 = arith.constant 0 : index
      %13 = vector.load %arg7[%c0_11, %c0_12] : memref<1x128xf32, #tpu.memory_space<vmem>>, vector<1x128xf32>
      tpu.vector_store %arg7[%c0_11, %c0_12], %12 {strides = array<i32>} : memref<1x128xf32, #tpu.memory_space<vmem>>, vector<1x128xf32>,
    } else {
    }
    %c0 = arith.constant 0 : index
    %c0_1 = arith.constant 0 : index
    %3 = vector.load %arg3[%c0, %c0_1] : memref<128x96xf32, #tpu.memory_space<vmem>>, vector<128x96xf32>
    %c0_2 = arith.constant 0 : index
    %c0_3 = arith.constant 0 : index
    %4 = vector.load %arg2[%c0_2, %c0_3] : memref<1x96xf32, #tpu.memory_space<vmem>>, vector<1x96xf32>
    %c0_4 = arith.constant 0 : index
    %c0_5 = arith.constant 0 : index
    %5 = vector.load %arg7[%c0_4, %c0_5] : memref<1x128xf32, #tpu.memory_space<vmem>>, vector<1x128xf32>
    %cst = arith.constant dense<0.000000e+00> : vector<1x128xf32>
    %6 = tpu.matmul %4, %3, %cst {dimension_numbers = #tpu.dot_dimension_numbers<[1], [1], [0], [0], [0, 0, 1, 0], [], []>} : vector<1x96xf32>, vector<128x96xf32>, vector<1x128xf32> -> vector<1x128xf32>
    %7 = arith.addf %5, %6 : vector<1x128xf32>
    %c0_6 = arith.constant 0 : index
    %c0_7 = arith.constant 0 : index
    %8 = vector.load %arg7[%c0_6, %c0_7] : memref<1x128xf32, #tpu.memory_space<vmem>>, vector<1x128xf32>
    tpu.vector_store %arg7[%c0_6, %c0_7], %7 {strides = array<i32>} : memref<1x128xf32, #tpu.memory_space<vmem>>, vector<1x128xf32>,
    %c0_i32_8 = arith.constant 0 : i32
    %9 = arith.cmpi eq, %arg1, %c0_i32_8 : i32
    %10 = arith.extui %9 : i1 to i32
    %c0_i32_9 = arith.constant 0 : i32
    %11 = arith.cmpi ne, %10, %c0_i32_9 : i32
    scf.if %11 {
      %c0_10 = arith.constant 0 : index
      %c0_11 = arith.constant 0 : index
      %12 = vector.load %arg7[%c0_10, %c0_11] : memref<1x128xf32, #tpu.memory_space<vmem>>, vector<1x128xf32>
      %c0_12 = arith.constant 0 : index
      %c0_13 = arith.constant 0 : index
      %13 = vector.load %arg4[%c0_12, %c0_13] : memref<1x128xf32, #tpu.memory_space<vmem>>, vector<1x128xf32>
      %14 = arith.mulf %12, %13 : vector<1x128xf32>
      %c0_14 = arith.constant 0 : index
      %c0_15 = arith.constant 0 : index
      %15 = memref.load %arg5[%c0_14, %c0_15] : memref<1x1xf32, #tpu.memory_space<smem>>
      %16 = vector.broadcast %15 : f32 to vector<1x128xf32>
      %17 = arith.mulf %14, %16 : vector<1x128xf32>
      %c0_16 = arith.constant 0 : index
      %c0_17 = arith.constant 0 : index
      %18 = vector.load %arg6[%c0_16, %c0_17] : memref<1x128xf32, #tpu.memory_space<vmem>>, vector<1x128xf32>
      tpu.vector_store %arg6[%c0_16, %c0_17], %17 {strides = array<i32>} : memref<1x128xf32, #tpu.memory_space<vmem>>, vector<1x128xf32>,
    } else {
    }
    return
  }
  func.func @transform_0(%arg0: i32, %arg1: i32) -> (i32, i32) {
    %c0_i32 = arith.constant 0 : i32
    %c0_i32_0 = arith.constant 0 : i32
    return %c0_i32, %arg1 : i32, i32
  }
  func.func @transform_1(%arg0: i32, %arg1: i32) -> (i32, i32) {
    %c0_i32 = arith.constant 0 : i32
    return %arg0, %arg1 : i32, i32
  }
  func.func @transform_2(%arg0: i32, %arg1: i32) -> (i32, i32) {
    %c0_i32 = arith.constant 0 : i32
    %c0_i32_0 = arith.constant 0 : i32
    return %c0_i32, %arg0 : i32, i32
  }
  func.func @transform_3(%arg0: i32, %arg1: i32) -> (i32, i32) {
    %c0_i32 = arith.constant 0 : i32
    %c0_i32_0 = arith.constant 0 : i32
    %c0_i32_1 = arith.constant 0 : i32
    return %c0_i32, %c0_i32_0 : i32, i32
  }
  func.func @transform_4(%arg0: i32, %arg1: i32) -> (i32, i32) {
    %c0_i32 = arith.constant 0 : i32
    %c0_i32_0 = arith.constant 0 : i32
    return %c0_i32, %arg0 : i32, i32
  }
}

</mosaic_0001>

<llo_original>
// kernel: _forward.1
$region0: #{_forward.1}
  #allocation0 [shape = 'u32[]', space=smem, size = 0x4, offset = 0x4, fixed_abs, tag = 'smem constant byte address 0x4 - core index']
  #allocation1 [shape = 'u32[72,128]{1,0:T(1,128)}', space=vmem, size = 0x9000, scoped, tag = 'internal scratch']
  #allocation2 [shape = 'f32[1,128]{1,0:T(1,128)}', space=vmem, size = 0x200, scoped, tag = 'scratch operand']
  #allocation3 [shape = 'f32[1,1]{1,0:T(1,128)S(6)}', space=smem, size = 0x200, scoped, tag = 'scoped memory for _forward.1']
  %s0 = inlined_call_operand.vmem [shape: f32[1,96], index: 0, kind: input, shape index: {}]
  %s1 = inlined_call_operand.vmem [shape: f32[384,96], index: 1, kind: input, shape index: {}]
  %s2 = inlined_call_operand.vmem [shape: f32[1,384], index: 2, kind: input, shape index: {}]
  %s3 = inlined_call_operand.<no memory space> [shape: f32[1,1], index: 3, kind: input, shape index: {}]
  %s4 = inlined_call_operand.vmem [shape: f32[1,384], index: 4, kind: output, shape index: {}]
  %s5 = sld [smem:[#allocation0]]
  $region57: #{_forward.1} parent=0
    _
  %s7 = ssub.s32 1, %s5
  %s8 = scalar_select 0, %s7, %s5
  %9 = sst [smem:[#allocation3]] %s3
  loop: start=0, step=1, limit=5
  $region2: #{_forward.1} parent=0 // loop_pre_header
    _
  $region3: #{_forward.1} parent=0 // loop_header
    %s11 = sphi 0, %s15
    %p12 = scmp.ge.s32.totalorder %s11, 5
    %s18 = sphi 0, %s30
    %s19 = sphi 0, %s26
    %s20 = sphi 0, %s18
    %s21 = sphi 0, %s19
    %s22 = sphi 0, %s20
    %s23 = sphi 0, %s21
    %s33 = sphi 0, %s35
    %s36 = sphi 0, %s33
    %s37 = sphi 0, %s36
    %s53 = sphi 0, %s37
    %s61 = sphi 0, %s63
    %s64 = sphi 0, %s61
    %s65 = sphi 0, %s64
    %s81 = sphi 0, %s65
    %s87 = sphi 0, %s89
    %s90 = sphi 0, %s87
    %s91 = sphi 0, %s90
    %s107 = sphi 0, %s91
    %s111 = sphi 0, %s111
    %s113 = sphi 0, %s111
    %s114 = sphi 0, %s113
    %s128 = sphi 0, %s114
    %s134 = sphi 0, %s136
    %s137 = sphi 0, %s134
    %s138 = sphi 0, %s137
    %s154 = sphi 0, %s138
  $region4: #{_forward.1} parent=0 // loop_header_branch
    %14 = sbr.rel (%p12) target = $region8
  $region5: #{_forward.1} parent=0 // loop_body
    %s16 = ssub.s32 %s11, 1
    %s17 = ssub.s32 %s11, 2
    %s24 = sadd.s32 1, %s19
    %p25 = scmp.ge.s32.totalorder %s24, 1
    %s26 = scalar_select %p25, 0, %s24
    %s27 = sadd.s32 1, %s18
    %s28 = scalar_select %p25, %s27, %s18
    %p29 = scmp.ge.s32.totalorder %s28, 3
    %s30 = scalar_select %p29, 0, %s28
    %s31 = ssub.s32 %s19, %s26
    %p32 = scmp.eq.s32.totalorder %s31, 0
    %s34 = sadd.s32 %s33, 1
    %s35 = scalar_select %p32, %s33, %s34
    %p38 = pneg %p32
    %p39 = scmp.eq.s32.totalorder %s11, 2
    %p40 = por %p38, %p39
    %p41 = scmp.ne.s32.totalorder %s33, %s36
    %p42 = scmp.eq.s32.totalorder %s11, 0
    %p43 = por %p41, %p42
    %p44 = scmp.ne.s32.totalorder %s33, %s36
    %p45 = scmp.eq.s32.totalorder %s16, 2
    %p46 = por %p44, %p45
    %p47 = scmp.ne.s32.totalorder %s36, %s37
    %p48 = scmp.eq.s32.totalorder %s16, 0
    %p49 = por %p47, %p48
    %p50 = scmp.ne.s32.totalorder %s36, %s37
    %p51 = scmp.eq.s32.totalorder %s17, 2
    %p52 = por %p50, %p51
    %p54 = scmp.ne.s32.totalorder %s37, %s53
    %p55 = scmp.eq.s32.totalorder %s17, 0
    %p56 = por %p54, %p55
    %s57 = ssub.s32 %s18, %s30
    %s58 = ssub.s32 %s19, %s26
    %s59 = sor.u32 %s57, %s58
    %p60 = scmp.eq.s32.totalorder %s59, 0
    %s62 = sadd.s32 %s61, 1
    %s63 = scalar_select %p60, %s61, %s62
    %p66 = pneg %p60
    %p67 = scmp.eq.s32.totalorder %s11, 2
    %p68 = por %p66, %p67
    %p69 = scmp.ne.s32.totalorder %s61, %s64
    %p70 = scmp.eq.s32.totalorder %s11, 0
    %p71 = por %p69, %p70
    %p72 = scmp.ne.s32.totalorder %s61, %s64
    %p73 = scmp.eq.s32.totalorder %s16, 2
    %p74 = por %p72, %p73
    %p75 = scmp.ne.s32.totalorder %s64, %s65
    %p76 = scmp.eq.s32.totalorder %s16, 0
    %p77 = por %p75, %p76
    %p78 = scmp.ne.s32.totalorder %s64, %s65
    %p79 = scmp.eq.s32.totalorder %s17, 2
    %p80 = por %p78, %p79
    %p82 = scmp.ne.s32.totalorder %s65, %s81
    %p83 = scmp.eq.s32.totalorder %s17, 0
    %p84 = por %p82, %p83
    %s85 = ssub.s32 %s18, %s30
    %p86 = scmp.eq.s32.totalorder %s85, 0
    %s88 = sadd.s32 %s87, 1
    %s89 = scalar_select %p86, %s87, %s88
    %p92 = pneg %p86
    %p93 = scmp.eq.s32.totalorder %s11, 2
    %p94 = por %p92, %p93
    %p95 = scmp.ne.s32.totalorder %s87, %s90
    %p96 = scmp.eq.s32.totalorder %s11, 0
    %p97 = por %p95, %p96
    %p98 = scmp.ne.s32.totalorder %s87, %s90
    %p99 = scmp.eq.s32.totalorder %s16, 2
    %p100 = por %p98, %p99
    %p101 = scmp.ne.s32.totalorder %s90, %s91
    %p102 = scmp.eq.s32.totalorder %s16, 0
    %p103 = por %p101, %p102
    %p104 = scmp.ne.s32.totalorder %s90, %s91
    %p105 = scmp.eq.s32.totalorder %s17, 2
    %p106 = por %p104, %p105
    %p108 = scmp.ne.s32.totalorder %s91, %s107
    %p109 = scmp.eq.s32.totalorder %s17, 0
    %p110 = por %p108, %p109
    %s112 = sadd.s32 %s111, 1
    %p115 = scmp.eq.s32.totalorder %s11, 2
    %p116 = scmp.ne.s32.totalorder %s111, %s113
    %p117 = scmp.eq.s32.totalorder %s11, 0
    %p118 = por %p116, %p117
    %p119 = scmp.ne.s32.totalorder %s111, %s113
    %p120 = scmp.eq.s32.totalorder %s16, 2
    %p121 = por %p119, %p120
    %p122 = scmp.ne.s32.totalorder %s113, %s114
    %p123 = scmp.eq.s32.totalorder %s16, 0
    %p124 = por %p122, %p123
    %p125 = scmp.ne.s32.totalorder %s113, %s114
    %p126 = scmp.eq.s32.totalorder %s17, 2
    %p127 = por %p125, %p126
    %p129 = scmp.ne.s32.totalorder %s114, %s128
    %p130 = scmp.eq.s32.totalorder %s17, 0
    %p131 = por %p129, %p130
    %s132 = ssub.s32 %s18, %s30
    %p133 = scmp.eq.s32.totalorder %s132, 0
    %s135 = sadd.s32 %s134, 1
    %s136 = scalar_select %p133, %s134, %s135
    %p139 = pneg %p133
    %p140 = scmp.eq.s32.totalorder %s11, 2
    %p141 = por %p139, %p140
    %p142 = scmp.ne.s32.totalorder %s134, %s137
    %p143 = scmp.eq.s32.totalorder %s11, 0
    %p144 = por %p142, %p143
    %p145 = scmp.ne.s32.totalorder %s134, %s137
    %p146 = scmp.eq.s32.totalorder %s16, 2
    %p147 = por %p145, %p146
    %p148 = scmp.ne.s32.totalorder %s137, %s138
    %p149 = scmp.eq.s32.totalorder %s16, 0
    %p150 = por %p148, %p149
    %p151 = scmp.ne.s32.totalorder %s137, %s138
    %p152 = scmp.eq.s32.totalorder %s17, 2
    %p153 = por %p151, %p152
    %p155 = scmp.ne.s32.totalorder %s138, %s154
    %p156 = scmp.eq.s32.totalorder %s17, 0
    %p157 = por %p155, %p156
    %p158 = scmp.le.s32.totalorder 1, %s11
    %p159 = scmp.lt.s32.totalorder %s11, 4
    %p160 = pnand %p158, %p159
    %p161 = pneg %p160
    // Predicated region
    $region9: #{_forward.1} parent=5 // pred_check
      _
    $region10: #{_forward.1} parent=5 // pred_check_branch
      %163 = sbr.rel (%p160) target = $region12
    $region11: #{_forward.1} parent=5 // pred_region
      %s164 = ssub.s32 %s11, 1
      // Predicated region
      $region13: #{_forward.1} parent=11 // pred_check
        %p165 = pneg %p49
      $region14: #{_forward.1} parent=11 // pred_check_branch
        %167 = sbr.rel (%p165) target = $region16
      $region15: #{_forward.1} parent=11 // pred_region
        %p168 = scmp.lt.s32.totalorder %s21, 0
        %s169 = scalar_select %p168, %s21, 0
        %s170 = scalar_lea.vmem %s0, %s169
      $region16: #{_forward.1} parent=11 // pred_fallthru
        _
      // Predicated region
      $region17: #{_forward.1} parent=11 // pred_check
        %p171 = pneg %p124
      $region18: #{_forward.1} parent=11 // pred_check_branch
        %173 = sbr.rel (%p171) target = $region20
      $region19: #{_forward.1} parent=11 // pred_region
        _
      $region20: #{_forward.1} parent=11 // pred_fallthru
        _
    $region12: #{_forward.1} parent=5 // pred_fallthru
      _
    %p174 = scmp.lt.s32.totalorder %s11, 3
    // Predicated region
    $region21: #{_forward.1} parent=5 // pred_check
      %p175 = pneg %p174
    $region22: #{_forward.1} parent=5 // pred_check_branch
      %177 = sbr.rel (%p175) target = $region24
    $region23: #{_forward.1} parent=5 // pred_region
      // Predicated region
      $region25: #{_forward.1} parent=23 // pred_check
        %p178 = pneg %p71
      $region26: #{_forward.1} parent=23 // pred_check_branch
        %180 = sbr.rel (%p178) target = $region28
      $region27: #{_forward.1} parent=23 // pred_region
        %s181 = smul.u32 16, %s18
        %p182 = scmp.lt.s32.totalorder %s181, 47
        %s183 = scalar_select %p182, %s181, 47
        %p184 = scmp.lt.s32.totalorder %s19, 0
        %s185 = scalar_select %p184, %s19, 0
        %s186 = sadd.s32 %s185, %s183
        %s187 = smul.addr %s186, 8
        %s188 = scalar_lea.vmem %s1, %s187
        %s189 = smul.u32 16, %s18
      $region28: #{_forward.1} parent=23 // pred_fallthru
        _
      // Predicated region
      $region29: #{_forward.1} parent=23 // pred_check
        %p190 = pneg %p97
      $region30: #{_forward.1} parent=23 // pred_check_branch
        %192 = sbr.rel (%p190) target = $region32
      $region31: #{_forward.1} parent=23 // pred_region
        %p193 = scmp.lt.s32.totalorder %s18, 2
        %s194 = scalar_select %p193, %s18, 2
        %s195 = scalar_lea.vmem %s2, %s194
      $region32: #{_forward.1} parent=23 // pred_fallthru
        _
    $region24: #{_forward.1} parent=5 // pred_fallthru
      _
    %p196 = scmp.le.s32.totalorder 1, %s11
    %p197 = scmp.lt.s32.totalorder %s11, 4
    %p198 = pnand %p196, %p197
    %p199 = pneg %p198
    // Predicated region
    $region33: #{_forward.1} parent=5 // pred_check
      _
    $region34: #{_forward.1} parent=5 // pred_check_branch
      %201 = sbr.rel (%p198) target = $region36
    $region35: #{_forward.1} parent=5 // pred_region
      %s202 = ssub.s32 %s11, 1
      %p203 = scmp.lt.s32.totalorder %s21, 0
      %s204 = scalar_select %p203, %s21, 0
      %s205 = scalar_lea.vmem %s0, %s204
      %p206 = pneg %p49
      %p207 = pneg %p46
      %s208 = smul.u32 16, %s20
      %p209 = scmp.lt.s32.totalorder %s208, 47
      %s210 = scalar_select %p209, %s208, 47
      %p211 = scmp.lt.s32.totalorder %s21, 0
      %s212 = scalar_select %p211, %s21, 0
      %s213 = sadd.s32 %s212, %s210
      %s214 = smul.addr %s213, 8
      %s215 = scalar_lea.vmem %s1, %s214
      %p216 = pneg %p77
      %p217 = pneg %p74
      %p218 = scmp.lt.s32.totalorder %s20, 2
      %s219 = scalar_select %p218, %s20, 2
      %s220 = scalar_lea.vmem %s2, %s219
      %p221 = pneg %p103
      %p222 = pneg %p100
      %p223 = pneg %p124
      %p224 = pneg %p121
      %p225 = pneg %p150
      %p226 = pneg %p147
      %p227 = scmp.lt.s32.totalorder %s20, 2
      %s228 = scalar_select %p227, %s20, 2
      %s229 = scalar_lea.vmem %s4, %s228
      %p230 = scmp.lt.s32.totalorder %s21, 0
      %s231 = scalar_select %p230, %s21, 0
      %s232 = scalar_lea.vmem %s0, %s231
      %s233 = smul.u32 16, %s20
      %p234 = scmp.lt.s32.totalorder %s233, 47
      %s235 = scalar_select %p234, %s233, 47
      %p236 = scmp.lt.s32.totalorder %s21, 0
      %s237 = scalar_select %p236, %s21, 0
      %s238 = sadd.s32 %s237, %s235
      %s239 = smul.addr %s238, 8
      %s240 = scalar_lea.vmem %s1, %s239
      %s241 = smul.u32 16, %s20
      %p242 = scmp.lt.s32.totalorder %s20, 2
      %s243 = scalar_select %p242, %s20, 2
      %s244 = scalar_lea.vmem %s2, %s243
      %p245 = scmp.lt.s32.totalorder %s20, 2
      %s246 = scalar_select %p245, %s20, 2
      %s247 = scalar_lea.vmem %s4, %s246
      %p248 = scmp.eq.s32.totalorder %s21, 0
      // Predicated region
      $region37: #{_forward.1} parent=35 // pred_check
        %p249 = pneg %p248
      $region38: #{_forward.1} parent=35 // pred_check_branch
        %251 = sbr.rel (%p249) target = $region40
      $region39: #{_forward.1} parent=35 // pred_region
        %252 = vst [vmem:[#allocation2] sm:$0x1] 0.0
      $region40: #{_forward.1} parent=35 // pred_fallthru
        _
      %v253 = vld [vmem:[%s240] sm:$0xff]
      %v254 = vld [vmem:[%s240 + $0x8] sm:$0xff]
      %v255 = vld [vmem:[%s240 + $0x10] sm:$0xff]
      %v256 = vld [vmem:[%s240 + $0x18] sm:$0xff]
      %v257 = vld [vmem:[%s240 + $0x20] sm:$0xff]
      %v258 = vld [vmem:[%s240 + $0x28] sm:$0xff]
      %v259 = vld [vmem:[%s240 + $0x30] sm:$0xff]
      %v260 = vld [vmem:[%s240 + $0x38] sm:$0xff]
      %v261 = vld [vmem:[%s240 + $0x40] sm:$0xff]
      %v262 = vld [vmem:[%s240 + $0x48] sm:$0xff]
      %v263 = vld [vmem:[%s240 + $0x50] sm:$0xff]
      %v264 = vld [vmem:[%s240 + $0x58] sm:$0xff]
      %v265 = vld [vmem:[%s240 + $0x60] sm:$0xff]
      %v266 = vld [vmem:[%s240 + $0x68] sm:$0xff]
      %v267 = vld [vmem:[%s240 + $0x70] sm:$0xff]
      %v268 = vld [vmem:[%s240 + $0x78] sm:$0xff]
      %v269 = vld [vmem:[%s232] sm:$0x1]
      %v270 = vld [vmem:[#allocation2] sm:$0x1]
      %vm271 = vcmask 785408
      %v273 = vsel %vm271, %v269, 0
      %v276 = vsel %vm271, %v253, 0
      %v279 = vsel %vm271, %v254, 0
      %v282 = vsel %vm271, %v255, 0
      %v285 = vsel %vm271, %v256, 0
      %v288 = vsel %vm271, %v257, 0
      %v291 = vsel %vm271, %v258, 0
      %v294 = vsel %vm271, %v259, 0
      %v297 = vsel %vm271, %v260, 0
      %v300 = vsel %vm271, %v261, 0
      %v303 = vsel %vm271, %v262, 0
      %v306 = vsel %vm271, %v263, 0
      %v309 = vsel %vm271, %v264, 0
      %v312 = vsel %vm271, %v265, 0
      %v315 = vsel %vm271, %v266, 0
      %v318 = vsel %vm271, %v267, 0
      %v321 = vsel %vm271, %v268, 0
      %323 = vmatpush.xpose.msra.mxu0 %v321
      %324 = vmatpush.xpose.msra.mxu0 %v318
      %325 = vmatpush.xpose.msra.mxu0 %v315
      %326 = vmatpush.xpose.msra.mxu0 %v312
      %327 = vmatpush.xpose.msra.mxu0 %v309
      %328 = vmatpush.xpose.msra.mxu0 %v306
      %329 = vmatpush.xpose.msra.mxu0 %v303
      %330 = vmatpush.xpose.msra.mxu0 %v300
      %331 = vmatpush.xpose.msra.mxu0 %v297
      %332 = vmatpush.xpose.msra.mxu0 %v294
      %333 = vmatpush.xpose.msra.mxu0 %v291
      %334 = vmatpush.xpose.msra.mxu0 %v288
      %335 = vmatpush.xpose.msra.mxu0 %v285
      %336 = vmatpush.xpose.msra.mxu0 %v282
      %337 = vmatpush.xpose.msra.mxu0 %v279
      %338 = vmatpush.xpose.msra.mxu0 %v276
      %339 = vmatmul.f32.gmra.mxu0 %v273
      %v340 = vpop.f32.mrf.mxu0
      %v341 = vadd.f32 0.0, %v340
      %342 = vdwg.mxu0
      %v343 = vadd.f32 %v270, %v341
      %344 = vst [vmem:[#allocation2] sm:$0x1] %v343
      // Predicated region
      $region41: #{_forward.1} parent=35 // pred_check
        %p345 = pneg %p248
      $region42: #{_forward.1} parent=35 // pred_check_branch
        %347 = sbr.rel (%p345) target = $region44
      $region43: #{_forward.1} parent=35 // pred_region
        %v348 = vld [vmem:[#allocation2] sm:$0x1]
        %v349 = vld [vmem:[%s244] sm:$0x1]
        %v350 = vmul.f32 %v348, %v349
        %s351 = sld [smem:[#allocation3]]
        %v352 = vstv %s351
        %v353 = vmul.f32 %v350, %v352
        %354 = vst [vmem:[%s247] sm:$0x1] %v353
      $region44: #{_forward.1} parent=35 // pred_fallthru
        _
      %p355 = scmp.lt.s32.totalorder %s20, 2
      %s356 = scalar_select %p355, %s20, 2
      %s357 = scalar_lea.vmem %s4, %s356
      // Predicated region
      $region45: #{_forward.1} parent=35 // pred_check
        %p358 = pneg %p147
      $region46: #{_forward.1} parent=35 // pred_check_branch
        %360 = sbr.rel (%p358) target = $region48
      $region47: #{_forward.1} parent=35 // pred_region
        _
      $region48: #{_forward.1} parent=35 // pred_fallthru
        _
    $region36: #{_forward.1} parent=5 // pred_fallthru
      _
    %p361 = scmp.le.s32.totalorder 2, %s11
    // Predicated region
    $region49: #{_forward.1} parent=5 // pred_check
      %p362 = pneg %p361
    $region50: #{_forward.1} parent=5 // pred_check_branch
      %364 = sbr.rel (%p362) target = $region52
    $region51: #{_forward.1} parent=5 // pred_region
      %s365 = ssub.s32 %s11, 2
      // Predicated region
      $region53: #{_forward.1} parent=51 // pred_check
        %p366 = pneg %p153
      $region54: #{_forward.1} parent=51 // pred_check_branch
        %368 = sbr.rel (%p366) target = $region56
      $region55: #{_forward.1} parent=51 // pred_region
        %p369 = scmp.lt.s32.totalorder %s22, 2
        %s370 = scalar_select %p369, %s22, 2
        %s371 = scalar_lea.vmem %s4, %s370
      $region56: #{_forward.1} parent=51 // pred_fallthru
        _
    $region52: #{_forward.1} parent=5 // pred_fallthru
      _
  $region6: #{_forward.1} parent=0 // loop_footer
    %s15 = sadd.s32 1, %s11
  $region7: #{_forward.1} parent=0 // loop_footer_branch
    %10 = sbr.rel target = $region3
  $region8: #{_forward.1} parent=0 // loop_exit
    _

</llo_original>
